<compile_context>
chip_gen: v7x
topology: tpu7x:2x2x1
jax: 0.10.0
libtpu: 0.0.40
codegen_flags: <defaults>
</compile_context>

<pallas_src>
import functools

import jax
import jax.numpy as jnp
from jax.experimental import pallas as pl
from jax.experimental.pallas import tpu as pltpu


def _label_smoothing_ce_kernel(x_ref, t_ref, loss_ref, *, smoothing, n_rows,
                               tile_n, num_classes):
    # x_ref: (tile_n, C) logits tile, t_ref: (tile_n, 1) int32 targets,
    # loss_ref: (tile_n, 1) per-row loss (rows beyond n_rows masked to 0).
    x = x_ref[...].astype(jnp.float32)                       # (tile_n, C) f32
    t = t_ref[...]                                           # (tile_n, 1) i32

    # Numerically stable logsumexp along the class (lane) axis.
    m = jnp.max(x, axis=-1, keepdims=True)                   # XLU reduce 1
    shifted = x - m
    # TODO(synk): on v7x with bf16 inputs, evaluating exp() on bf16 operands
    # (f32 accumulation) roughly doubles EUP throughput; keep f32 here until a
    # bundle dump confirms EUP is the saturating slot.
    lse = jnp.log(jnp.sum(jnp.exp(shifted), axis=-1, keepdims=True))  # EUP + XLU 2

    # Fused label-smoothing weights: confidence*onehot + smoothing/C.
    confidence = 1.0 - smoothing
    off_w = smoothing / num_classes
    on_w = confidence + off_w
    col = jax.lax.broadcasted_iota(jnp.int32, x.shape, 1)
    w = jnp.where(col == t, on_w, off_w)                     # (tile_n, C)

    # loss_row = confidence*nll + smoothing*smooth  ==  lse - sum(w * shifted)
    loss = lse - jnp.sum(w * shifted, axis=-1, keepdims=True)  # XLU reduce 3

    # Mask rows beyond the true batch size (partial last tile reads garbage
    # logits with no pad in the wrapper). Must stay a select, not a multiply,
    # so NaN/Inf garbage cannot leak through.
    row = jax.lax.broadcasted_iota(jnp.int32, (tile_n, 1), 0)
    global_row = pl.program_id(0) * tile_n + row
    valid = global_row < n_rows
    loss_ref[...] = jnp.where(valid, loss, 0.0)


def label_smoothing_cross_entropy(x, target, smoothing: float = 0.1,
                                  tile_n: int | None = None):
    """x: (N, C) float (f32 or bf16) logits; target: (N,) int labels.

    Returns the scalar f32 label-smoothing cross-entropy loss (mean over N).
    """
    n, c = x.shape
    t2d = target.astype(jnp.int32).reshape(n, 1)   # tiny; no pad of x needed

    # --- Generation-aware VMEM budgets ------------------------------------
    try:
        vmem_cap = pltpu.get_tpu_info().vmem_capacity_bytes
    except Exception:
        vmem_cap = 64 * 1024 * 1024                # conservative (v7x-sized)
    if vmem_cap >= 128 * 1024 * 1024:              # v5e / v6e: 128 MiB physical
        vmem_limit = 80 * 1024 * 1024
    else:                                          # v7x: 64 MiB physical
        vmem_limit = 44 * 1024 * 1024

    # --- Tile sizing: purely by bytes, accounting for f32 temporaries ------
    row_in_bytes = c * x.dtype.itemsize
    row_f32_bytes = c * 4
    # f32 working-set copies between the two reduction passes (shifted, exp,
    # weighted product; +1 for the bf16->f32 upcast of x itself).
    n_tmp = 3 if x.dtype == jnp.float32 else 4
    per_row_cost = 2 * row_in_bytes + n_tmp * row_f32_bytes  # 2x = double-buffer

    if tile_n is None:
        usable = vmem_limit - 4 * 1024 * 1024      # headroom for Mosaic scratch
        tile_n = max(8, (usable // per_row_cost) // 8 * 8)
        # Keep >= 2 grid steps so the "parallel" batch axis shards across both
        # TensorCores on v7x (negligible extra step cost on 1-TC chips).
        if tile_n >= n and n > 8:
            tile_n = ((pl.cdiv(n, 2) + 7) // 8) * 8

    if n < 8:
        # Block sublane dim must be a multiple of 8 OR equal the array dim.
        tile_n = n
    else:
        tile_n = max(8, min((tile_n // 8) * 8, ((n + 7) // 8) * 8))

    grid = (pl.cdiv(n, tile_n),)

    kernel = functools.partial(
        _label_smoothing_ce_kernel,
        smoothing=float(smoothing),
        n_rows=n,
        tile_n=tile_n,
        num_classes=c,
    )

    cost = pl.CostEstimate(
        flops=6 * n * c,                 # sub, cmp/select, mul, 3 lane-reduces
        transcendentals=n * c,           # exp (+ n logs, negligible)
        bytes_accessed=n * row_in_bytes + n * 4 + n * 4,
    )

    per_row = pl.pallas_call(
        kernel,
        out_shape=jax.ShapeDtypeStruct((n, 1), jnp.float32),
        grid=grid,
        in_specs=[
            pl.BlockSpec((tile_n, c), lambda i: (i, 0)),   # logits tile
            pl.BlockSpec((tile_n, 1), lambda i: (i, 0)),   # target tile
        ],
        out_specs=pl.BlockSpec((tile_n, 1), lambda i: (i, 0)),
        compiler_params=pltpu.CompilerParams(
            dimension_semantics=("parallel",),             # shard rows on v7x 2xTC
            vmem_limit_bytes=vmem_limit,
        ),
        cost_estimate=cost,
    )(x, t2d)

    # TODO(synk): for vocab-sized C add a second "arbitrary" grid axis over
    # classes with an online logsumexp so each VMEM tile stays bounded.
    # TODO(synk): optionally sweep pipeline_mode=pl.Buffered(3) on the logits
    # spec if a trace shows exposed DMA at tile boundaries.
    # Masked rows are exactly 0 (and partial-block rows are never written);
    # the final mean is a trivial XLA reduce over N f32 values.
    return jnp.sum(per_row) / n


def _reference(x, target, smoothing=0.1):
    xf = x.astype(jnp.float32)
    logprobs = jax.nn.log_softmax(xf, axis=-1)
    nll = -jnp.take_along_axis(logprobs, target[:, None].astype(jnp.int32),
                               axis=-1)[:, 0]
    smooth = -jnp.mean(logprobs, axis=-1)
    return jnp.mean((1.0 - smoothing) * nll + smoothing * smooth)


if __name__ == "__main__":
    key = jax.random.PRNGKey(0)
    kx, kt = jax.random.split(key)

    # Case 1: small f32, single tile.
    N, C = 8, 32
    x = jax.random.normal(kx, (N, C), dtype=jnp.float32)
    target = jax.random.randint(kt, (N,), 0, C, dtype=jnp.int32)
    loss = label_smoothing_cross_entropy(x, target, smoothing=0.1)
    jax.block_until_ready(loss)
    ref = _reference(x, target, 0.1)
    assert jnp.allclose(loss, ref, atol=1e-5, rtol=1e-5), (loss, ref)

    # Case 2: N not a multiple of 8 — no wrapper pad, partial last tile + mask.
    N2, C2 = 13, 32
    x2 = jax.random.normal(jax.random.fold_in(kx, 1), (N2, C2), dtype=jnp.float32)
    t2 = jax.random.randint(jax.random.fold_in(kt, 1), (N2,), 0, C2, dtype=jnp.int32)
    loss2 = label_smoothing_cross_entropy(x2, t2, smoothing=0.1)
    jax.block_until_ready(loss2)
    ref2 = _reference(x2, t2, 0.1)
    assert jnp.allclose(loss2, ref2, atol=1e-5, rtol=1e-5), (loss2, ref2)

    # Case 3: multiple row tiles (grid > 1) with bf16 logits in HBM.
    N3, C3 = 24, 128
    x3 = jax.random.normal(jax.random.fold_in(kx, 2), (N3, C3), dtype=jnp.bfloat16)
    t3 = jax.random.randint(jax.random.fold_in(kt, 2), (N3,), 0, C3, dtype=jnp.int32)
    loss3 = label_smoothing_cross_entropy(x3, t3, smoothing=0.1, tile_n=8)
    jax.block_until_ready(loss3)
    ref3 = _reference(x3, t3, 0.1)
    assert jnp.allclose(loss3, ref3, atol=1e-4, rtol=1e-4), (loss3, ref3)

    # Case 4: N < 8 — block sublane dim equals the full array dim.
    N4, C4 = 6, 128
    x4 = jax.random.normal(jax.random.fold_in(kx, 3), (N4, C4), dtype=jnp.float32)
    t4 = jax.random.randint(jax.random.fold_in(kt, 3), (N4,), 0, C4, dtype=jnp.int32)
    loss4 = label_smoothing_cross_entropy(x4, t4, smoothing=0.1)
    jax.block_until_ready(loss4)
    ref4 = _reference(x4, t4, 0.1)
    assert jnp.allclose(loss4, ref4, atol=1e-5, rtol=1e-5), (loss4, ref4)

    print("KERNEL_OK")
</pallas_src>

<mosaic_0001>
module attributes {stable_mosaic.version = 11 : i64} {
  func.func @_label_smoothing_ce_kernel(%arg0: i32, %arg1: memref<8x32xf32, #tpu.memory_space<vmem>>, %arg2: memref<8x1xi32, #tpu.memory_space<vmem>>, %arg3: memref<8x1xf32, #tpu.memory_space<vmem>>) attributes {dimension_semantics = [#tpu.dimension_semantics<parallel>], iteration_bounds = array<i64: 1>, scalar_prefetch = 0 : i64, scratch_operands = 0 : i64, tpu.core_type = #tpu.core_type<tc>, window_params = [{transform_indices = @transform_0, window_bounds = array<i64: 8, 32>}, {transform_indices = @transform_1, window_bounds = array<i64: 8, 1>}, {transform_indices = @transform_2, window_bounds = array<i64: 8, 1>}]} {
    %c0 = arith.constant 0 : index
    %c0_0 = arith.constant 0 : index
    %0 = vector.load %arg1[%c0, %c0_0] : memref<8x32xf32, #tpu.memory_space<vmem>>, vector<8x32xf32>
    %c0_1 = arith.constant 0 : index
    %c0_2 = arith.constant 0 : index
    %1 = vector.load %arg2[%c0_1, %c0_2] : memref<8x1xi32, #tpu.memory_space<vmem>>, vector<8x1xi32>
    %cst = arith.constant dense<0xFF800000> : vector<8xf32>
    %2 = vector.multi_reduction <maximumf>, %0, %cst [1] : vector<8x32xf32> to vector<8xf32>
    %3 = vector.shape_cast %2 : vector<8xf32> to vector<8x1xf32>
    %4 = vector.broadcast %3 : vector<8x1xf32> to vector<8x32xf32>
    %5 = arith.subf %0, %4 : vector<8x32xf32>
    %6 = math.exp %5 : vector<8x32xf32>
    %cst_3 = arith.constant dense<0.000000e+00> : vector<8xf32>
    %7 = vector.multi_reduction <add>, %6, %cst_3 [1] : vector<8x32xf32> to vector<8xf32>
    %8 = vector.shape_cast %7 : vector<8xf32> to vector<8x1xf32>
    %9 = math.log %8 : vector<8x1xf32>
    %10 = tpu.iota {dimensions = array<i32: 1>} : vector<8x32xi32>
    %11 = vector.broadcast %1 : vector<8x1xi32> to vector<8x32xi32>
    %12 = arith.cmpi eq, %10, %11 : vector<8x32xi32>
    %cst_4 = arith.constant 0.903124988 : f32
    %cst_5 = arith.constant 3.125000e-03 : f32
    %13 = vector.broadcast %cst_4 : f32 to vector<8x32xf32>
    %14 = vector.broadcast %cst_5 : f32 to vector<8x32xf32>
    %15 = arith.select %12, %13, %14 : vector<8x32xi1>, vector<8x32xf32>
    %16 = arith.mulf %15, %5 : vector<8x32xf32>
    %cst_6 = arith.constant dense<0.000000e+00> : vector<8xf32>
    %17 = vector.multi_reduction <add>, %16, %cst_6 [1] : vector<8x32xf32> to vector<8xf32>
    %18 = vector.shape_cast %17 : vector<8xf32> to vector<8x1xf32>
    %19 = arith.subf %9, %18 : vector<8x1xf32>
    %20 = tpu.iota {dimensions = array<i32: 0>} : vector<8x1xi32>
    %c8_i32 = arith.constant 8 : i32
    %21 = arith.muli %arg0, %c8_i32 : i32
    %22 = vector.broadcast %21 : i32 to vector<8x1xi32>
    %23 = arith.addi %22, %20 : vector<8x1xi32>
    %c8_i32_7 = arith.constant 8 : i32
    %24 = vector.broadcast %c8_i32_7 : i32 to vector<8x1xi32>
    %25 = arith.cmpi slt, %23, %24 : vector<8x1xi32>
    %cst_8 = arith.constant 0.000000e+00 : f32
    %26 = vector.broadcast %cst_8 : f32 to vector<8x1xf32>
    %27 = arith.select %25, %19, %26 : vector<8x1xi1>, vector<8x1xf32>
    %c0_9 = arith.constant 0 : index
    %c0_10 = arith.constant 0 : index
    %28 = vector.load %arg3[%c0_9, %c0_10] : memref<8x1xf32, #tpu.memory_space<vmem>>, vector<8x1xf32>
    tpu.vector_store %arg3[%c0_9, %c0_10], %27 {strides = array<i32>} : memref<8x1xf32, #tpu.memory_space<vmem>>, vector<8x1xf32>,
    return
  }
  func.func @transform_0(%arg0: i32) -> (i32, i32) {
    %c0_i32 = arith.constant 0 : i32
    %c0_i32_0 = arith.constant 0 : i32
    return %arg0, %c0_i32 : i32, i32
  }
  func.func @transform_1(%arg0: i32) -> (i32, i32) {
    %c0_i32 = arith.constant 0 : i32
    %c0_i32_0 = arith.constant 0 : i32
    return %arg0, %c0_i32 : i32, i32
  }
  func.func @transform_2(%arg0: i32) -> (i32, i32) {
    %c0_i32 = arith.constant 0 : i32
    %c0_i32_0 = arith.constant 0 : i32
    return %arg0, %c0_i32 : i32, i32
  }
}

</mosaic_0001>

<llo_original>
// kernel: tpu_custom_call.1
$region0: #{tpu_custom_call.1}
  #allocation0 [shape = 'u32[]', space=smem, size = 0x4, offset = 0x4, fixed_abs, tag = 'smem constant byte address 0x4 - core index']
  #allocation1 [shape = 'u32[144,128]{1,0:T(1,128)}', space=vmem, size = 0x12000, scoped, tag = 'internal scratch']
  %s0 = inlined_call_operand.vmem [shape: f32[8,32], index: 0, kind: input, shape index: {}]
  %s1 = inlined_call_operand.vmem [shape: s32[8,1], index: 1, kind: input, shape index: {}]
  %s2 = inlined_call_operand.vmem [shape: f32[8,1], index: 2, kind: output, shape index: {}]
  %s3 = sld [smem:[#allocation0]]
  $region18: #{tpu_custom_call.1} parent=0
    _
  %s5 = ssub.s32 1, %s3
  %s6 = scalar_select 0, %s5, %s3
  // Predicated region
  $region2: #{tpu_custom_call.1} parent=0 // pred_check
    _
  $region3: #{tpu_custom_call.1} parent=0 // pred_check_branch
    %8 = sbr.rel (0) target = $region5
  $region4: #{tpu_custom_call.1} parent=0 // pred_region
    _
  $region5: #{tpu_custom_call.1} parent=0 // pred_fallthru
    _
  // Predicated region
  $region6: #{tpu_custom_call.1} parent=0 // pred_check
    _
  $region7: #{tpu_custom_call.1} parent=0 // pred_check_branch
    %10 = sbr.rel (0) target = $region9
  $region8: #{tpu_custom_call.1} parent=0 // pred_region
    _
  $region9: #{tpu_custom_call.1} parent=0 // pred_fallthru
    _
  %v11 = vld [vmem:[%s0] sm:$0xff]
  %v12 = vld [vmem:[%s1] sm:$0xff]
  %vm13 = vcmask 261120
  %v14 = vsel %vm13, %v11, -inf
  %15 = vmax.xlane.f32.xlu0 %v14
  %v16 = vpop.xlane.xlu0 %15
  %v17 = vsub.f32 %v11, %v16
  %v18 = vmul.f32 %v17, 1.442695
  %v19 = vpow.pop %v18
  %v20 = vsel %vm13, %v19, 0.0
  %21 = vadd.xlane.f32.xlu0 %v20
  %v22 = vpop.xlane.xlu0 %21
  %v23 = vlog2.pop %v22
  %v24 = vmul.f32 %v23, 0.6931472
  %v25 = vlaneseq
  %v26 = vand.u32 %v25, 127
  %27 = vset.pattern.permute.xlu0 0
  %28 = vperm.xlu0 %27, %v12
  %v29 = vpop.permute.xlu0 %28
  %vm30 = vcmp.eq.s32.totalorder %v26, %v29
  %v31 = vsel %vm30, 0.903125, 0.003125
  %v32 = vmul.f32 %v31, %v17
  %v33 = vsel %vm13, %v32, 0.0
  %34 = vadd.xlane.f32.xlu0 %v33
  %v35 = vpop.xlane.xlu0 %34
  %v36 = vsub.f32 %v24, %v35
  %v37 = vlaneseq
  %v38 = vshrl.u32 %v37, 7
  %s39 = smul.u32 0, 8
  %v40 = vstv %s39
  %v41 = vadd.s32 %v40, %v38
  %vm42 = vcmp.lt.s32.totalorder %v41, 8
  %v43 = vsel %vm42, %v36, 0.0
  %vm44 = vcmask 7168
  %45 = vst.msk [vmem:[%s2] sm:$0xff] %vm44, %v43
  // Predicated region
  $region10: #{tpu_custom_call.1} parent=0 // pred_check
    _
  $region11: #{tpu_custom_call.1} parent=0 // pred_check_branch
    %47 = sbr.rel (0) target = $region13
  $region12: #{tpu_custom_call.1} parent=0 // pred_region
    _
  $region13: #{tpu_custom_call.1} parent=0 // pred_fallthru
    _
  // Predicated region
  $region14: #{tpu_custom_call.1} parent=0 // pred_check
    _
  $region15: #{tpu_custom_call.1} parent=0 // pred_check_branch
    %49 = sbr.rel (0) target = $region17
  $region16: #{tpu_custom_call.1} parent=0 // pred_region
    _
  $region17: #{tpu_custom_call.1} parent=0 // pred_fallthru
    _

</llo_original>
